<compile_context>
chip_gen: v7x
topology: tpu7x:2x2x1
jax: 0.10.0
libtpu: 0.0.40
codegen_flags: <defaults>
</compile_context>

<pallas_src>
import jax
import jax.numpy as jnp
from jax.experimental import pallas as pl
from jax.experimental.pallas import tpu as pltpu

C_IN = 64        # input channels to the replaced head (model.conv_1x1)
C_OUT = 51       # output channels of every 1x1 conv in this module
MAX_TILE_P = 2048  # max spatial positions per grid step (mem-bound sweet spot)


def _final_layer_kernel(x_ref, w0_ref, b0_ref, wu_ref, bu_ref, wv_ref, bv_ref,
                        u_ref, v_ref):
    # x_ref: (1, C_IN, TILE_P); weights: (C_out, C_in); biases: (C_out, 1).
    x = x_ref[0]                                            # (C_IN, TILE_P)
    # model head: 1x1 conv 64->51 + ReLU  (channel-first matmul on the MXU)
    y = jnp.dot(w0_ref[...], x, preferred_element_type=jnp.float32) + b0_ref[...]
    y = jnp.maximum(y, 0.0)                                 # (C_OUT, TILE_P)
    # U / V heads: 1x1 convs 51->51; outputs are lane-dense (last dim TILE_P).
    u_ref[0] = (jnp.dot(wu_ref[...], y, preferred_element_type=jnp.float32)
                + bu_ref[...]).astype(u_ref.dtype)
    v_ref[0] = (jnp.dot(wv_ref[...], y, preferred_element_type=jnp.float32)
                + bv_ref[...]).astype(v_ref.dtype)


def _choose_tile_p(p):
    """Largest tile (<= MAX_TILE_P) that divides the spatial extent cleanly."""
    for t in (MAX_TILE_P, 1024, 512, 256, 128):
        if p % t == 0:
            return t
    # Fallback: lane-aligned tile + cdiv grid; boundary blocks are handled by
    # Pallas (padded loads / masked stores), and every spatial column is
    # independent so padding garbage never leaks into real outputs.
    return min(MAX_TILE_P, pl.cdiv(p, 128) * 128)


@jax.jit
def final_layer_forward(x_nchw, w0, b0, wu, bu, wv, bv):
    """x_nchw: (N, 64, H, W) float32. Returns (U, V), each (N, 51, H, W)."""
    n, c, h, w = x_nchw.shape
    assert c == C_IN
    p = h * w

    # Free reshapes only: stay channel-first, spatial flattened on the lane axis.
    x3 = x_nchw.reshape(n, C_IN, p)

    # PyTorch conv weights are (Cout, Cin, 1, 1) -> (Cout, Cin) matrices;
    # biases become (Cout, 1) columns that broadcast over the spatial axis.
    w0_m = w0.reshape(C_OUT, C_IN)
    wu_m = wu.reshape(C_OUT, C_OUT)
    wv_m = wv.reshape(C_OUT, C_OUT)
    b0_c = b0.reshape(C_OUT, 1)
    bu_c = bu.reshape(C_OUT, 1)
    bv_c = bv.reshape(C_OUT, 1)

    tile_p = _choose_tile_p(p)
    grid = (n, pl.cdiv(p, tile_p))

    const_spec = lambda shape: pl.BlockSpec(shape, lambda i, j: (0, 0))

    u3, v3 = pl.pallas_call(
        _final_layer_kernel,
        out_shape=(jax.ShapeDtypeStruct((n, C_OUT, p), jnp.float32),
                   jax.ShapeDtypeStruct((n, C_OUT, p), jnp.float32)),
        grid_spec=pltpu.PrefetchScalarGridSpec(
            num_scalar_prefetch=0,
            grid=grid,
            in_specs=[
                pl.BlockSpec((1, C_IN, tile_p), lambda i, j: (i, 0, j)),  # X
                const_spec((C_OUT, C_IN)),    # W0
                const_spec((C_OUT, 1)),       # b0
                const_spec((C_OUT, C_OUT)),   # WU
                const_spec((C_OUT, 1)),       # bU
                const_spec((C_OUT, C_OUT)),   # WV
                const_spec((C_OUT, 1)),       # bV
            ],
            out_specs=[
                pl.BlockSpec((1, C_OUT, tile_p), lambda i, j: (i, 0, j)),  # U
                pl.BlockSpec((1, C_OUT, tile_p), lambda i, j: (i, 0, j)),  # V
            ],
        ),
        compiler_params=pltpu.CompilerParams(
            dimension_semantics=("parallel", "parallel")),
    )(x3, w0_m, b0_c, wu_m, bu_c, wv_m, bv_c)

    # (N, 51, H*W) -> (N, 51, H, W): free reshape, no transpose.
    return u3.reshape(n, C_OUT, h, w), v3.reshape(n, C_OUT, h, w)


def _init_conv_params(key, c_out, c_in):
    # Deterministic synthetic init (PyTorch-style uniform bound 1/sqrt(fan_in)).
    kw, kb = jax.random.split(key)
    bound = 1.0 / jnp.sqrt(jnp.float32(c_in))
    w = jax.random.uniform(kw, (c_out, c_in, 1, 1), jnp.float32, -bound, bound)
    b = jax.random.uniform(kb, (c_out,), jnp.float32, -bound, bound)
    return w, b


def _reference(x_nchw, w0, b0, wu, bu, wv, bv):
    # Plain-JAX reference for the same 1x1-conv pipeline (NCHW).
    def conv1x1(x, w, b):
        y = jnp.einsum('nchw,oc->nohw', x, w[:, :, 0, 0])
        return y + b[None, :, None, None]
    y = jax.nn.relu(conv1x1(x_nchw, w0, b0))
    return conv1x1(y, wu, bu), conv1x1(y, wv, bv)


if __name__ == "__main__":
    key = jax.random.PRNGKey(0)
    kx, k0, ku, kv = jax.random.split(key, 4)

    # Small deterministic input consistent with the module: N=2, C=64, 16x16.
    x = jax.random.normal(kx, (2, C_IN, 16, 16), jnp.float32)

    w0, b0 = _init_conv_params(k0, C_OUT, C_IN)   # model.conv_1x1 : 64 -> 51
    wu, bu = _init_conv_params(ku, C_OUT, C_OUT)  # conv_1x1_U     : 51 -> 51
    wv, bv = _init_conv_params(kv, C_OUT, C_OUT)  # conv_1x1_V     : 51 -> 51

    u, v = final_layer_forward(x, w0, b0, wu, bu, wv, bv)
    jax.block_until_ready((u, v))

    u_ref, v_ref = _reference(x, w0, b0, wu, bu, wv, bv)
    assert u.shape == (2, C_OUT, 16, 16) and v.shape == (2, C_OUT, 16, 16)
    assert jnp.allclose(u, u_ref, atol=1e-4, rtol=1e-4)
    assert jnp.allclose(v, v_ref, atol=1e-4, rtol=1e-4)

    print("KERNEL_OK")
</pallas_src>

<mosaic_0001>
module attributes {stable_mosaic.version = 11 : i64} {
  func.func @_final_layer_kernel(%arg0: i32, %arg1: i32, %arg2: memref<1x64x256xf32, #tpu.memory_space<vmem>>, %arg3: memref<51x64xf32, #tpu.memory_space<vmem>>, %arg4: memref<51x1xf32, #tpu.memory_space<vmem>>, %arg5: memref<51x51xf32, #tpu.memory_space<vmem>>, %arg6: memref<51x1xf32, #tpu.memory_space<vmem>>, %arg7: memref<51x51xf32, #tpu.memory_space<vmem>>, %arg8: memref<51x1xf32, #tpu.memory_space<vmem>>, %arg9: memref<1x51x256xf32, #tpu.memory_space<vmem>>, %arg10: memref<1x51x256xf32, #tpu.memory_space<vmem>>) attributes {dimension_semantics = [#tpu.dimension_semantics<parallel>, #tpu.dimension_semantics<parallel>], iteration_bounds = array<i64: 2, 1>, scalar_prefetch = 0 : i64, scratch_operands = 0 : i64, tpu.core_type = #tpu.core_type<tc>, window_params = [{transform_indices = @transform_0, window_bounds = array<i64: 1, 64, 256>}, {pipeline_mode = #tpu.pipeline_mode<synchronous>, transform_indices = @transform_1, window_bounds = array<i64: 51, 64>}, {pipeline_mode = #tpu.pipeline_mode<synchronous>, transform_indices = @transform_2, window_bounds = array<i64: 51, 1>}, {pipeline_mode = #tpu.pipeline_mode<synchronous>, transform_indices = @transform_3, window_bounds = array<i64: 51, 51>}, {pipeline_mode = #tpu.pipeline_mode<synchronous>, transform_indices = @transform_4, window_bounds = array<i64: 51, 1>}, {pipeline_mode = #tpu.pipeline_mode<synchronous>, transform_indices = @transform_5, window_bounds = array<i64: 51, 51>}, {pipeline_mode = #tpu.pipeline_mode<synchronous>, transform_indices = @transform_6, window_bounds = array<i64: 51, 1>}, {transform_indices = @transform_7, window_bounds = array<i64: 1, 51, 256>}, {transform_indices = @transform_8, window_bounds = array<i64: 1, 51, 256>}]} {
    %c0 = arith.constant 0 : index
    %c0_0 = arith.constant 0 : index
    %c0_1 = arith.constant 0 : index
    %0 = vector.load %arg2[%c0, %c0_0, %c0_1] : memref<1x64x256xf32, #tpu.memory_space<vmem>>, vector<1x64x256xf32>
    %1 = vector.shape_cast %0 : vector<1x64x256xf32> to vector<64x256xf32>
    %c0_2 = arith.constant 0 : index
    %c0_3 = arith.constant 0 : index
    %2 = vector.load %arg3[%c0_2, %c0_3] : memref<51x64xf32, #tpu.memory_space<vmem>>, vector<51x64xf32>
    %cst = arith.constant dense<0.000000e+00> : vector<51x256xf32>
    %3 = tpu.matmul %2, %1, %cst {dimension_numbers = #tpu.dot_dimension_numbers<[1], [0], [0], [1], [0, 0, 1, 1], [], []>} : vector<51x64xf32>, vector<64x256xf32>, vector<51x256xf32> -> vector<51x256xf32>
    %c0_4 = arith.constant 0 : index
    %c0_5 = arith.constant 0 : index
    %4 = vector.load %arg4[%c0_4, %c0_5] : memref<51x1xf32, #tpu.memory_space<vmem>>, vector<51x1xf32>
    %5 = vector.broadcast %4 : vector<51x1xf32> to vector<51x256xf32>
    %6 = arith.addf %3, %5 : vector<51x256xf32>
    %cst_6 = arith.constant 0.000000e+00 : f32
    %7 = vector.broadcast %cst_6 : f32 to vector<51x256xf32>
    %8 = arith.maximumf %6, %7 : vector<51x256xf32>
    %c0_7 = arith.constant 0 : index
    %c0_8 = arith.constant 0 : index
    %9 = vector.load %arg5[%c0_7, %c0_8] : memref<51x51xf32, #tpu.memory_space<vmem>>, vector<51x51xf32>
    %cst_9 = arith.constant dense<0.000000e+00> : vector<51x256xf32>
    %10 = tpu.matmul %9, %8, %cst_9 {dimension_numbers = #tpu.dot_dimension_numbers<[1], [0], [0], [1], [0, 0, 1, 1], [], []>} : vector<51x51xf32>, vector<51x256xf32>, vector<51x256xf32> -> vector<51x256xf32>
    %c0_10 = arith.constant 0 : index
    %c0_11 = arith.constant 0 : index
    %11 = vector.load %arg6[%c0_10, %c0_11] : memref<51x1xf32, #tpu.memory_space<vmem>>, vector<51x1xf32>
    %12 = vector.broadcast %11 : vector<51x1xf32> to vector<51x256xf32>
    %13 = arith.addf %10, %12 : vector<51x256xf32>
    %c0_12 = arith.constant 0 : index
    %c0_13 = arith.constant 0 : index
    %c0_14 = arith.constant 0 : index
    %14 = vector.load %arg9[%c0_12, %c0_13, %c0_14] : memref<1x51x256xf32, #tpu.memory_space<vmem>>, vector<1x51x256xf32>
    %15 = vector.shape_cast %14 : vector<1x51x256xf32> to vector<51x256xf32>
    %16 = vector.shape_cast %13 : vector<51x256xf32> to vector<1x51x256xf32>
    tpu.vector_store %arg9[%c0_12, %c0_13, %c0_14], %16 {strides = array<i32>} : memref<1x51x256xf32, #tpu.memory_space<vmem>>, vector<1x51x256xf32>,
    %c0_15 = arith.constant 0 : index
    %c0_16 = arith.constant 0 : index
    %17 = vector.load %arg7[%c0_15, %c0_16] : memref<51x51xf32, #tpu.memory_space<vmem>>, vector<51x51xf32>
    %cst_17 = arith.constant dense<0.000000e+00> : vector<51x256xf32>
    %18 = tpu.matmul %17, %8, %cst_17 {dimension_numbers = #tpu.dot_dimension_numbers<[1], [0], [0], [1], [0, 0, 1, 1], [], []>} : vector<51x51xf32>, vector<51x256xf32>, vector<51x256xf32> -> vector<51x256xf32>
    %c0_18 = arith.constant 0 : index
    %c0_19 = arith.constant 0 : index
    %19 = vector.load %arg8[%c0_18, %c0_19] : memref<51x1xf32, #tpu.memory_space<vmem>>, vector<51x1xf32>
    %20 = vector.broadcast %19 : vector<51x1xf32> to vector<51x256xf32>
    %21 = arith.addf %18, %20 : vector<51x256xf32>
    %c0_20 = arith.constant 0 : index
    %c0_21 = arith.constant 0 : index
    %c0_22 = arith.constant 0 : index
    %22 = vector.load %arg10[%c0_20, %c0_21, %c0_22] : memref<1x51x256xf32, #tpu.memory_space<vmem>>, vector<1x51x256xf32>
    %23 = vector.shape_cast %22 : vector<1x51x256xf32> to vector<51x256xf32>
    %24 = vector.shape_cast %21 : vector<51x256xf32> to vector<1x51x256xf32>
    tpu.vector_store %arg10[%c0_20, %c0_21, %c0_22], %24 {strides = array<i32>} : memref<1x51x256xf32, #tpu.memory_space<vmem>>, vector<1x51x256xf32>,
    return
  }
  func.func @transform_0(%arg0: i32, %arg1: i32) -> (i32, i32, i32) {
    %c0_i32 = arith.constant 0 : i32
    %c0_i32_0 = arith.constant 0 : i32
    return %arg0, %c0_i32, %arg1 : i32, i32, i32
  }
  func.func @transform_1(%arg0: i32, %arg1: i32) -> (i32, i32) {
    %c0_i32 = arith.constant 0 : i32
    %c0_i32_0 = arith.constant 0 : i32
    %c0_i32_1 = arith.constant 0 : i32
    return %c0_i32, %c0_i32_0 : i32, i32
  }
  func.func @transform_2(%arg0: i32, %arg1: i32) -> (i32, i32) {
    %c0_i32 = arith.constant 0 : i32
    %c0_i32_0 = arith.constant 0 : i32
    %c0_i32_1 = arith.constant 0 : i32
    return %c0_i32, %c0_i32_0 : i32, i32
  }
  func.func @transform_3(%arg0: i32, %arg1: i32) -> (i32, i32) {
    %c0_i32 = arith.constant 0 : i32
    %c0_i32_0 = arith.constant 0 : i32
    %c0_i32_1 = arith.constant 0 : i32
    return %c0_i32, %c0_i32_0 : i32, i32
  }
  func.func @transform_4(%arg0: i32, %arg1: i32) -> (i32, i32) {
    %c0_i32 = arith.constant 0 : i32
    %c0_i32_0 = arith.constant 0 : i32
    %c0_i32_1 = arith.constant 0 : i32
    return %c0_i32, %c0_i32_0 : i32, i32
  }
  func.func @transform_5(%arg0: i32, %arg1: i32) -> (i32, i32) {
    %c0_i32 = arith.constant 0 : i32
    %c0_i32_0 = arith.constant 0 : i32
    %c0_i32_1 = arith.constant 0 : i32
    return %c0_i32, %c0_i32_0 : i32, i32
  }
  func.func @transform_6(%arg0: i32, %arg1: i32) -> (i32, i32) {
    %c0_i32 = arith.constant 0 : i32
    %c0_i32_0 = arith.constant 0 : i32
    %c0_i32_1 = arith.constant 0 : i32
    return %c0_i32, %c0_i32_0 : i32, i32
  }
  func.func @transform_7(%arg0: i32, %arg1: i32) -> (i32, i32, i32) {
    %c0_i32 = arith.constant 0 : i32
    %c0_i32_0 = arith.constant 0 : i32
    return %arg0, %c0_i32, %arg1 : i32, i32, i32
  }
  func.func @transform_8(%arg0: i32, %arg1: i32) -> (i32, i32, i32) {
    %c0_i32 = arith.constant 0 : i32
    %c0_i32_0 = arith.constant 0 : i32
    return %arg0, %c0_i32, %arg1 : i32, i32, i32
  }
}

</mosaic_0001>

<llo_original>
// kernel: final_layer_forward.1
$region0: #{final_layer_forward.1}
  #allocation0 [shape = 'u32[]', space=smem, size = 0x4, offset = 0x4, fixed_abs, tag = 'smem constant byte address 0x4 - core index']
  #allocation1 [shape = 'u32[144,128]{1,0:T(1,128)}', space=vmem, size = 0x12000, scoped, tag = 'internal scratch']
  %s0 = inlined_call_operand.vmem [shape: f32[2,64,256], index: 0, kind: input, shape index: {}]
  %s1 = inlined_call_operand.vmem [shape: f32[51,64], index: 1, kind: input, shape index: {}]
  %s2 = inlined_call_operand.vmem [shape: f32[51,1], index: 2, kind: input, shape index: {}]
  %s3 = inlined_call_operand.vmem [shape: f32[51,51], index: 3, kind: input, shape index: {}]
  %s4 = inlined_call_operand.vmem [shape: f32[51,1], index: 4, kind: input, shape index: {}]
  %s5 = inlined_call_operand.vmem [shape: f32[51,51], index: 5, kind: input, shape index: {}]
  %s6 = inlined_call_operand.vmem [shape: f32[51,1], index: 6, kind: input, shape index: {}]
  %s7 = inlined_call_operand.vmem [shape: f32[2,51,256], index: 7, kind: output, shape index: {0}]
  %s8 = inlined_call_operand.vmem [shape: f32[2,51,256], index: 8, kind: output, shape index: {1}]
  %9 = xla_tuple %s7, %s8
  %s10 = sld [smem:[#allocation0]]
  $region69: #{final_layer_forward.1} parent=0
    _
  %s12 = ssub.s32 1, %s10
  %s13 = scalar_select 0, %s12, %s10
  loop: start=0, step=1, limit=4
  $region2: #{final_layer_forward.1} parent=0 // loop_pre_header
    _
  $region3: #{final_layer_forward.1} parent=0 // loop_header
    %s15 = sphi 0, %s19
    %p16 = scmp.ge.s32.totalorder %s15, 4
    %s22 = sphi 0, %s34
    %s23 = sphi 0, %s30
    %s24 = sphi 0, %s22
    %s25 = sphi 0, %s23
    %s26 = sphi 0, %s24
    %s27 = sphi 0, %s25
    %s39 = sphi 0, %s41
    %s42 = sphi 0, %s39
    %s43 = sphi 0, %s42
    %s59 = sphi 0, %s43
    %s63 = sphi 0, %s63
    %s65 = sphi 0, %s63
    %s66 = sphi 0, %s65
    %s80 = sphi 0, %s66
    %s84 = sphi 0, %s84
    %s86 = sphi 0, %s84
    %s87 = sphi 0, %s86
    %s101 = sphi 0, %s87
    %s105 = sphi 0, %s105
    %s107 = sphi 0, %s105
    %s108 = sphi 0, %s107
    %s122 = sphi 0, %s108
    %s126 = sphi 0, %s126
    %s128 = sphi 0, %s126
    %s129 = sphi 0, %s128
    %s143 = sphi 0, %s129
    %s147 = sphi 0, %s147
    %s149 = sphi 0, %s147
    %s150 = sphi 0, %s149
    %s164 = sphi 0, %s150
    %s168 = sphi 0, %s168
    %s170 = sphi 0, %s168
    %s171 = sphi 0, %s170
    %s185 = sphi 0, %s171
    %s193 = sphi 0, %s195
    %s196 = sphi 0, %s193
    %s197 = sphi 0, %s196
    %s213 = sphi 0, %s197
    %s221 = sphi 0, %s223
    %s224 = sphi 0, %s221
    %s225 = sphi 0, %s224
    %s241 = sphi 0, %s225
  $region4: #{final_layer_forward.1} parent=0 // loop_header_branch
    %18 = sbr.rel (%p16) target = $region8
  $region5: #{final_layer_forward.1} parent=0 // loop_body
    %s20 = ssub.s32 %s15, 1
    %s21 = ssub.s32 %s15, 2
    %s28 = sadd.s32 1, %s23
    %p29 = scmp.ge.s32.totalorder %s28, 1
    %s30 = scalar_select %p29, 0, %s28
    %s31 = sadd.s32 1, %s22
    %s32 = scalar_select %p29, %s31, %s22
    %p33 = scmp.ge.s32.totalorder %s32, 2
    %s34 = scalar_select %p33, 0, %s32
    %s35 = ssub.s32 %s22, %s34
    %s36 = ssub.s32 %s23, %s30
    %s37 = sor.u32 %s35, %s36
    %p38 = scmp.eq.s32.totalorder %s37, 0
    %s40 = sadd.s32 %s39, 1
    %s41 = scalar_select %p38, %s39, %s40
    %p44 = pneg %p38
    %p45 = scmp.eq.s32.totalorder %s15, 1
    %p46 = por %p44, %p45
    %p47 = scmp.ne.s32.totalorder %s39, %s42
    %p48 = scmp.eq.s32.totalorder %s15, 0
    %p49 = por %p47, %p48
    %p50 = scmp.ne.s32.totalorder %s39, %s42
    %p51 = scmp.eq.s32.totalorder %s20, 1
    %p52 = por %p50, %p51
    %p53 = scmp.ne.s32.totalorder %s42, %s43
    %p54 = scmp.eq.s32.totalorder %s20, 0
    %p55 = por %p53, %p54
    %p56 = scmp.ne.s32.totalorder %s42, %s43
    %p57 = scmp.eq.s32.totalorder %s21, 1
    %p58 = por %p56, %p57
    %p60 = scmp.ne.s32.totalorder %s43, %s59
    %p61 = scmp.eq.s32.totalorder %s21, 0
    %p62 = por %p60, %p61
    %s64 = sadd.s32 %s63, 1
    %p67 = scmp.eq.s32.totalorder %s15, 1
    %p68 = scmp.ne.s32.totalorder %s63, %s65
    %p69 = scmp.eq.s32.totalorder %s15, 0
    %p70 = por %p68, %p69
    %p71 = scmp.ne.s32.totalorder %s63, %s65
    %p72 = scmp.eq.s32.totalorder %s20, 1
    %p73 = por %p71, %p72
    %p74 = scmp.ne.s32.totalorder %s65, %s66
    %p75 = scmp.eq.s32.totalorder %s20, 0
    %p76 = por %p74, %p75
    %p77 = scmp.ne.s32.totalorder %s65, %s66
    %p78 = scmp.eq.s32.totalorder %s21, 1
    %p79 = por %p77, %p78
    %p81 = scmp.ne.s32.totalorder %s66, %s80
    %p82 = scmp.eq.s32.totalorder %s21, 0
    %p83 = por %p81, %p82
    %s85 = sadd.s32 %s84, 1
    %p88 = scmp.eq.s32.totalorder %s15, 1
    %p89 = scmp.ne.s32.totalorder %s84, %s86
    %p90 = scmp.eq.s32.totalorder %s15, 0
    %p91 = por %p89, %p90
    %p92 = scmp.ne.s32.totalorder %s84, %s86
    %p93 = scmp.eq.s32.totalorder %s20, 1
    %p94 = por %p92, %p93
    %p95 = scmp.ne.s32.totalorder %s86, %s87
    %p96 = scmp.eq.s32.totalorder %s20, 0
    %p97 = por %p95, %p96
    %p98 = scmp.ne.s32.totalorder %s86, %s87
    %p99 = scmp.eq.s32.totalorder %s21, 1
    %p100 = por %p98, %p99
    %p102 = scmp.ne.s32.totalorder %s87, %s101
    %p103 = scmp.eq.s32.totalorder %s21, 0
    %p104 = por %p102, %p103
    %s106 = sadd.s32 %s105, 1
    %p109 = scmp.eq.s32.totalorder %s15, 1
    %p110 = scmp.ne.s32.totalorder %s105, %s107
    %p111 = scmp.eq.s32.totalorder %s15, 0
    %p112 = por %p110, %p111
    %p113 = scmp.ne.s32.totalorder %s105, %s107
    %p114 = scmp.eq.s32.totalorder %s20, 1
    %p115 = por %p113, %p114
    %p116 = scmp.ne.s32.totalorder %s107, %s108
    %p117 = scmp.eq.s32.totalorder %s20, 0
    %p118 = por %p116, %p117
    %p119 = scmp.ne.s32.totalorder %s107, %s108
    %p120 = scmp.eq.s32.totalorder %s21, 1
    %p121 = por %p119, %p120
    %p123 = scmp.ne.s32.totalorder %s108, %s122
    %p124 = scmp.eq.s32.totalorder %s21, 0
    %p125 = por %p123, %p124
    %s127 = sadd.s32 %s126, 1
    %p130 = scmp.eq.s32.totalorder %s15, 1
    %p131 = scmp.ne.s32.totalorder %s126, %s128
    %p132 = scmp.eq.s32.totalorder %s15, 0
    %p133 = por %p131, %p132
    %p134 = scmp.ne.s32.totalorder %s126, %s128
    %p135 = scmp.eq.s32.totalorder %s20, 1
    %p136 = por %p134, %p135
    %p137 = scmp.ne.s32.totalorder %s128, %s129
    %p138 = scmp.eq.s32.totalorder %s20, 0
    %p139 = por %p137, %p138
    %p140 = scmp.ne.s32.totalorder %s128, %s129
    %p141 = scmp.eq.s32.totalorder %s21, 1
    %p142 = por %p140, %p141
    %p144 = scmp.ne.s32.totalorder %s129, %s143
    %p145 = scmp.eq.s32.totalorder %s21, 0
    %p146 = por %p144, %p145
    %s148 = sadd.s32 %s147, 1
    %p151 = scmp.eq.s32.totalorder %s15, 1
    %p152 = scmp.ne.s32.totalorder %s147, %s149
    %p153 = scmp.eq.s32.totalorder %s15, 0
    %p154 = por %p152, %p153
    %p155 = scmp.ne.s32.totalorder %s147, %s149
    %p156 = scmp.eq.s32.totalorder %s20, 1
    %p157 = por %p155, %p156
    %p158 = scmp.ne.s32.totalorder %s149, %s150
    %p159 = scmp.eq.s32.totalorder %s20, 0
    %p160 = por %p158, %p159
    %p161 = scmp.ne.s32.totalorder %s149, %s150
    %p162 = scmp.eq.s32.totalorder %s21, 1
    %p163 = por %p161, %p162
    %p165 = scmp.ne.s32.totalorder %s150, %s164
    %p166 = scmp.eq.s32.totalorder %s21, 0
    %p167 = por %p165, %p166
    %s169 = sadd.s32 %s168, 1
    %p172 = scmp.eq.s32.totalorder %s15, 1
    %p173 = scmp.ne.s32.totalorder %s168, %s170
    %p174 = scmp.eq.s32.totalorder %s15, 0
    %p175 = por %p173, %p174
    %p176 = scmp.ne.s32.totalorder %s168, %s170
    %p177 = scmp.eq.s32.totalorder %s20, 1
    %p178 = por %p176, %p177
    %p179 = scmp.ne.s32.totalorder %s170, %s171
    %p180 = scmp.eq.s32.totalorder %s20, 0
    %p181 = por %p179, %p180
    %p182 = scmp.ne.s32.totalorder %s170, %s171
    %p183 = scmp.eq.s32.totalorder %s21, 1
    %p184 = por %p182, %p183
    %p186 = scmp.ne.s32.totalorder %s171, %s185
    %p187 = scmp.eq.s32.totalorder %s21, 0
    %p188 = por %p186, %p187
    %s189 = ssub.s32 %s22, %s34
    %s190 = ssub.s32 %s23, %s30
    %s191 = sor.u32 %s189, %s190
    %p192 = scmp.eq.s32.totalorder %s191, 0
    %s194 = sadd.s32 %s193, 1
    %s195 = scalar_select %p192, %s193, %s194
    %p198 = pneg %p192
    %p199 = scmp.eq.s32.totalorder %s15, 1
    %p200 = por %p198, %p199
    %p201 = scmp.ne.s32.totalorder %s193, %s196
    %p202 = scmp.eq.s32.totalorder %s15, 0
    %p203 = por %p201, %p202
    %p204 = scmp.ne.s32.totalorder %s193, %s196
    %p205 = scmp.eq.s32.totalorder %s20, 1
    %p206 = por %p204, %p205
    %p207 = scmp.ne.s32.totalorder %s196, %s197
    %p208 = scmp.eq.s32.totalorder %s20, 0
    %p209 = por %p207, %p208
    %p210 = scmp.ne.s32.totalorder %s196, %s197
    %p211 = scmp.eq.s32.totalorder %s21, 1
    %p212 = por %p210, %p211
    %p214 = scmp.ne.s32.totalorder %s197, %s213
    %p215 = scmp.eq.s32.totalorder %s21, 0
    %p216 = por %p214, %p215
    %s217 = ssub.s32 %s22, %s34
    %s218 = ssub.s32 %s23, %s30
    %s219 = sor.u32 %s217, %s218
    %p220 = scmp.eq.s32.totalorder %s219, 0
    %s222 = sadd.s32 %s221, 1
    %s223 = scalar_select %p220, %s221, %s222
    %p226 = pneg %p220
    %p227 = scmp.eq.s32.totalorder %s15, 1
    %p228 = por %p226, %p227
    %p229 = scmp.ne.s32.totalorder %s221, %s224
    %p230 = scmp.eq.s32.totalorder %s15, 0
    %p231 = por %p229, %p230
    %p232 = scmp.ne.s32.totalorder %s221, %s224
    %p233 = scmp.eq.s32.totalorder %s20, 1
    %p234 = por %p232, %p233
    %p235 = scmp.ne.s32.totalorder %s224, %s225
    %p236 = scmp.eq.s32.totalorder %s20, 0
    %p237 = por %p235, %p236
    %p238 = scmp.ne.s32.totalorder %s224, %s225
    %p239 = scmp.eq.s32.totalorder %s21, 1
    %p240 = por %p238, %p239
    %p242 = scmp.ne.s32.totalorder %s225, %s241
    %p243 = scmp.eq.s32.totalorder %s21, 0
    %p244 = por %p242, %p243
    %p245 = scmp.le.s32.totalorder 1, %s15
    %p246 = scmp.lt.s32.totalorder %s15, 3
    %p247 = pnand %p245, %p246
    %p248 = pneg %p247
    // Predicated region
    $region9: #{final_layer_forward.1} parent=5 // pred_check
      _
    $region10: #{final_layer_forward.1} parent=5 // pred_check_branch
      %250 = sbr.rel (%p247) target = $region12
    $region11: #{final_layer_forward.1} parent=5 // pred_region
      %s251 = ssub.s32 %s15, 1
      // Predicated region
      $region13: #{final_layer_forward.1} parent=11 // pred_check
        %p252 = pneg %p76
      $region14: #{final_layer_forward.1} parent=11 // pred_check_branch
        %254 = sbr.rel (%p252) target = $region16
      $region15: #{final_layer_forward.1} parent=11 // pred_region
        _
      $region16: #{final_layer_forward.1} parent=11 // pred_fallthru
        _
      // Predicated region
      $region17: #{final_layer_forward.1} parent=11 // pred_check
        %p255 = pneg %p97
      $region18: #{final_layer_forward.1} parent=11 // pred_check_branch
        %257 = sbr.rel (%p255) target = $region20
      $region19: #{final_layer_forward.1} parent=11 // pred_region
        _
      $region20: #{final_layer_forward.1} parent=11 // pred_fallthru
        _
      // Predicated region
      $region21: #{final_layer_forward.1} parent=11 // pred_check
        %p258 = pneg %p118
      $region22: #{final_layer_forward.1} parent=11 // pred_check_branch
        %260 = sbr.rel (%p258) target = $region24
      $region23: #{final_layer_forward.1} parent=11 // pred_region
        _
      $region24: #{final_layer_forward.1} parent=11 // pred_fallthru
        _
      // Predicated region
      $region25: #{final_layer_forward.1} parent=11 // pred_check
        %p261 = pneg %p139
      $region26: #{final_layer_forward.1} parent=11 // pred_check_branch
        %263 = sbr.rel (%p261) target = $region28
      $region27: #{final_layer_forward.1} parent=11 // pred_region
        _
      $region28: #{final_layer_forward.1} parent=11 // pred_fallthru
        _
      // Predicated region
      $region29: #{final_layer_forward.1} parent=11 // pred_check
        %p264 = pneg %p160
      $region30: #{final_layer_forward.1} parent=11 // pred_check_branch
        %266 = sbr.rel (%p264) target = $region32
      $region31: #{final_layer_forward.1} parent=11 // pred_region
        _
      $region32: #{final_layer_forward.1} parent=11 // pred_fallthru
        _
      // Predicated region
      $region33: #{final_layer_forward.1} parent=11 // pred_check
        %p267 = pneg %p181
      $region34: #{final_layer_forward.1} parent=11 // pred_check_branch
        %269 = sbr.rel (%p267) target = $region36
      $region35: #{final_layer_forward.1} parent=11 // pred_region
        _
      $region36: #{final_layer_forward.1} parent=11 // pred_fallthru
        _
    $region12: #{final_layer_forward.1} parent=5 // pred_fallthru
      _
    %p270 = scmp.lt.s32.totalorder %s15, 2
    // Predicated region
    $region37: #{final_layer_forward.1} parent=5 // pred_check
      %p271 = pneg %p270
    $region38: #{final_layer_forward.1} parent=5 // pred_check_branch
      %273 = sbr.rel (%p271) target = $region40
    $region39: #{final_layer_forward.1} parent=5 // pred_region
      // Predicated region
      $region41: #{final_layer_forward.1} parent=39 // pred_check
        %p274 = pneg %p49
      $region42: #{final_layer_forward.1} parent=39 // pred_check_branch
        %276 = sbr.rel (%p274) target = $region44
      $region43: #{final_layer_forward.1} parent=39 // pred_region
        %s277 = smul.u32 2, %s23
        %p278 = scmp.lt.s32.totalorder %s22, 1
        %s279 = scalar_select %p278, %s22, 1
        %p280 = scmp.lt.s32.totalorder %s277, 1
        %s281 = scalar_select %p280, %s277, 1
        %s282 = smul.addr %s279, 16
        %s283 = sadd.s32 %s281, %s282
        %s284 = smul.addr %s283, 8
        %s285 = scalar_lea.vmem %s0, %s284
        %s286 = smul.u32 2, %s23
      $region44: #{final_layer_forward.1} parent=39 // pred_fallthru
        _
    $region40: #{final_layer_forward.1} parent=5 // pred_fallthru
      _
    %p287 = scmp.le.s32.totalorder 1, %s15
    %p288 = scmp.lt.s32.totalorder %s15, 3
    %p289 = pnand %p287, %p288
    %p290 = pneg %p289
    // Predicated region
    $region45: #{final_layer_forward.1} parent=5 // pred_check
      _
    $region46: #{final_layer_forward.1} parent=5 // pred_check_branch
      %292 = sbr.rel (%p289) target = $region48
    $region47: #{final_layer_forward.1} parent=5 // pred_region
      %s293 = ssub.s32 %s15, 1
      %s294 = smul.u32 2, %s25
      %p295 = scmp.lt.s32.totalorder %s24, 1
      %s296 = scalar_select %p295, %s24, 1
      %p297 = scmp.lt.s32.totalorder %s294, 1
      %s298 = scalar_select %p297, %s294, 1
      %s299 = smul.addr %s296, 16
      %s300 = sadd.s32 %s298, %s299
      %s301 = smul.addr %s300, 8
      %s302 = scalar_lea.vmem %s0, %s301
      %p303 = pneg %p55
      %p304 = pneg %p52
      %p305 = pneg %p76
      %p306 = pneg %p73
      %p307 = pneg %p97
      %p308 = pneg %p94
      %p309 = pneg %p118
      %p310 = pneg %p115
      %p311 = pneg %p139
      %p312 = pneg %p136
      %p313 = pneg %p160
      %p314 = pneg %p157
      %p315 = pneg %p181
      %p316 = pneg %p178
      %p317 = pneg %p209
      %p318 = pneg %p206
      %s319 = smul.u32 2, %s25
      %p320 = scmp.lt.s32.totalorder %s24, 1
      %s321 = scalar_select %p320, %s24, 1
      %p322 = scmp.lt.s32.totalorder %s319, 1
      %s323 = scalar_select %p322, %s319, 1
      %s324 = smul.addr %s321, 14
      %s325 = sadd.s32 %s323, %s324
      %s326 = smul.addr %s325, 8
      %s327 = scalar_lea.vmem %s7, %s326
      %p328 = pneg %p237
      %p329 = pneg %p234
      %s330 = smul.u32 2, %s25
      %p331 = scmp.lt.s32.totalorder %s24, 1
      %s332 = scalar_select %p331, %s24, 1
      %p333 = scmp.lt.s32.totalorder %s330, 1
      %s334 = scalar_select %p333, %s330, 1
      %s335 = smul.addr %s332, 14
      %s336 = sadd.s32 %s334, %s335
      %s337 = smul.addr %s336, 8
      %s338 = scalar_lea.vmem %s8, %s337
      %s339 = smul.u32 2, %s25
      %p340 = scmp.lt.s32.totalorder %s24, 1
      %s341 = scalar_select %p340, %s24, 1
      %p342 = scmp.lt.s32.totalorder %s339, 1
      %s343 = scalar_select %p342, %s339, 1
      %s344 = smul.addr %s341, 16
      %s345 = sadd.s32 %s343, %s344
      %s346 = smul.addr %s345, 8
      %s347 = scalar_lea.vmem %s0, %s346
      %s348 = smul.u32 2, %s25
      %s349 = smul.u32 2, %s25
      %p350 = scmp.lt.s32.totalorder %s24, 1
      %s351 = scalar_select %p350, %s24, 1
      %p352 = scmp.lt.s32.totalorder %s349, 1
      %s353 = scalar_select %p352, %s349, 1
      %s354 = smul.addr %s351, 14
      %s355 = sadd.s32 %s353, %s354
      %s356 = smul.addr %s355, 8
      %s357 = scalar_lea.vmem %s7, %s356
      %s358 = smul.u32 2, %s25
      %s359 = smul.u32 2, %s25
      %p360 = scmp.lt.s32.totalorder %s24, 1
      %s361 = scalar_select %p360, %s24, 1
      %p362 = scmp.lt.s32.totalorder %s359, 1
      %s363 = scalar_select %p362, %s359, 1
      %s364 = smul.addr %s361, 14
      %s365 = sadd.s32 %s363, %s364
      %s366 = smul.addr %s365, 8
      %s367 = scalar_lea.vmem %s8, %s366
      %s368 = smul.u32 2, %s25
      %v369 = vld [vmem:[%s347] sm:$0xff]
      %v370 = vld [vmem:[%s347 + $0x8] sm:$0xff]
      %v371 = vld [vmem:[%s347 + $0x10] sm:$0xff]
      %v372 = vld [vmem:[%s347 + $0x18] sm:$0xff]
      %v373 = vld [vmem:[%s347 + $0x20] sm:$0xff]
      %v374 = vld [vmem:[%s347 + $0x28] sm:$0xff]
      %v375 = vld [vmem:[%s347 + $0x30] sm:$0xff]
      %v376 = vld [vmem:[%s347 + $0x38] sm:$0xff]
      %v377 = vld [vmem:[%s347 + $0x40] sm:$0xff]
      %v378 = vld [vmem:[%s347 + $0x48] sm:$0xff]
      %v379 = vld [vmem:[%s347 + $0x50] sm:$0xff]
      %v380 = vld [vmem:[%s347 + $0x58] sm:$0xff]
      %v381 = vld [vmem:[%s347 + $0x60] sm:$0xff]
      %v382 = vld [vmem:[%s347 + $0x68] sm:$0xff]
      %v383 = vld [vmem:[%s347 + $0x70] sm:$0xff]
      %v384 = vld [vmem:[%s347 + $0x78] sm:$0xff]
      %v385 = vld [vmem:[%s1] sm:$0xff]
      %v386 = vld [vmem:[%s1 + $0x8] sm:$0xff]
      %v387 = vld [vmem:[%s1 + $0x10] sm:$0xff]
      %v388 = vld [vmem:[%s1 + $0x18] sm:$0xff]
      %v389 = vld [vmem:[%s1 + $0x20] sm:$0xff]
      %v390 = vld [vmem:[%s1 + $0x28] sm:$0xff]
      %v391 = vld [vmem:[%s1 + $0x30] sm:$0x7]
      %v392 = vld [vmem:[%s2] sm:$0xff]
      %v393 = vld [vmem:[%s2 + $0x8] sm:$0xff]
      %v394 = vld [vmem:[%s2 + $0x10] sm:$0xff]
      %v395 = vld [vmem:[%s2 + $0x18] sm:$0xff]
      %v396 = vld [vmem:[%s2 + $0x20] sm:$0xff]
      %v397 = vld [vmem:[%s2 + $0x28] sm:$0xff]
      %v398 = vld [vmem:[%s2 + $0x30] sm:$0x7]
      %400 = vset.pattern.permute.xlu0 0
      %401 = vperm.xlu0 %400, %v392
      %v402 = vpop.permute.xlu0 %401
      %405 = vset.pattern.permute.xlu0 0
      %406 = vperm.xlu0 %405, %v393
      %v407 = vpop.permute.xlu0 %406
      %410 = vset.pattern.permute.xlu0 0
      %411 = vperm.xlu0 %410, %v394
      %v412 = vpop.permute.xlu0 %411
      %415 = vset.pattern.permute.xlu0 0
      %416 = vperm.xlu0 %415, %v395
      %v417 = vpop.permute.xlu0 %416
      %420 = vset.pattern.permute.xlu0 0
      %421 = vperm.xlu0 %420, %v396
      %v422 = vpop.permute.xlu0 %421
      %425 = vset.pattern.permute.xlu0 0
      %426 = vperm.xlu0 %425, %v397
      %v427 = vpop.permute.xlu0 %426
      %430 = vset.pattern.permute.xlu0 0
      %431 = vperm.xlu0 %430, %v398
      %v432 = vpop.permute.xlu0 %431
      %vm434 = vcmask 523264
      %v436 = vsel %vm434, %v385, 0
      %v439 = vsel %vm434, %v386, 0
      %v442 = vsel %vm434, %v387, 0
      %v445 = vsel %vm434, %v388, 0
      %v448 = vsel %vm434, %v389, 0
      %v451 = vsel %vm434, %v390, 0
      %v454 = vsel %vm434, %v391, 0
      %456 = vmatprep.subr.mxu0 %v370
      %457 = vmatpush1.msra.mxu0 %v369
      %458 = vmatprep.subr.mxu0 %v372
      %459 = vmatpush1.msra.mxu0 %v371
      %460 = vmatprep.subr.mxu0 %v374
      %461 = vmatpush1.msra.mxu0 %v373
      %462 = vmatprep.subr.mxu0 %v376
      %463 = vmatpush1.msra.mxu0 %v375
      %464 = vmatprep.subr.mxu0 %v378
      %465 = vmatpush1.msra.mxu0 %v377
      %466 = vmatprep.subr.mxu0 %v380
      %467 = vmatpush1.msra.mxu0 %v379
      %468 = vmatprep.subr.mxu0 %v382
      %469 = vmatpush1.msra.mxu0 %v381
      %470 = vmatprep.subr.mxu0 %v384
      %471 = vmatpush1.msra.mxu0 %v383
      %472 = vmatprep.subr.mxu0 0.0
      %473 = vmatpush1.msra.mxu0 0.0
      %474 = vmatprep.subr.mxu0 0.0
      %475 = vmatpush1.msra.mxu0 0.0
      %476 = vmatprep.subr.mxu0 0.0
      %477 = vmatpush1.msra.mxu0 0.0
      %478 = vmatprep.subr.mxu0 0.0
      %479 = vmatpush1.msra.mxu0 0.0
      %480 = vmatprep.subr.mxu0 0.0
      %481 = vmatpush1.msra.mxu0 0.0
      %482 = vmatprep.subr.mxu0 0.0
      %483 = vmatpush1.msra.mxu0 0.0
      %484 = vmatprep.subr.mxu0 0.0
      %485 = vmatpush1.msra.mxu0 0.0
      %486 = vmatprep.subr.mxu0 0.0
      %487 = vmatpush1.msra.mxu0 0.0
      %488 = vmatprep.subr.mxu0 0.0
      %489 = vmatpush1.msra.mxu0 0.0
      %490 = vmatprep.subr.mxu0 0.0
      %491 = vmatpush1.msra.mxu0 0.0
      %492 = vmatprep.subr.mxu0 0.0
      %493 = vmatpush1.msra.mxu0 0.0
      %494 = vmatprep.subr.mxu0 0.0
      %495 = vmatpush1.msra.mxu0 0.0
      %496 = vmatprep.subr.mxu0 0.0
      %497 = vmatpush1.msra.mxu0 0.0
      %498 = vmatprep.subr.mxu0 0.0
      %499 = vmatpush1.msra.mxu0 0.0
      %500 = vmatprep.subr.mxu0 0.0
      %501 = vmatpush1.msra.mxu0 0.0
      %502 = vmatprep.subr.mxu0 0.0
      %503 = vmatpush1.msra.mxu0 0.0
      %504 = vmatprep.subr.mxu0 0.0
      %505 = vmatpush1.msra.mxu0 0.0
      %506 = vmatprep.subr.mxu0 0.0
      %507 = vmatpush1.msra.mxu0 0.0
      %508 = vmatprep.subr.mxu0 0.0
      %509 = vmatpush1.msra.mxu0 0.0
      %510 = vmatprep.subr.mxu0 0.0
      %511 = vmatpush1.msra.mxu0 0.0
      %512 = vmatprep.subr.mxu0 0.0
      %513 = vmatpush1.msra.mxu0 0.0
      %514 = vmatprep.subr.mxu0 0.0
      %515 = vmatpush1.msra.mxu0 0.0
      %516 = vmatprep.subr.mxu0 0.0
      %517 = vmatpush1.msra.mxu0 0.0
      %518 = vmatprep.subr.mxu0 0.0
      %519 = vmatpush1.msra.mxu0 0.0
      %520 = vmatprep.mubr.f32.mxu0 0.0
      %521 = vmatmul.mubr.f32.gmra.mrb[0].mxu0 %v436
      %v522 = vpop.f32.mrb[0].mxu0
      %v523 = vadd.f32 %v402, %v522
      %v524 = vpop.f32.mrb[0].mxu0
      %v525 = vadd.f32 %v402, %v524
      %526 = vmatprep.mubr.f32.mxu0 0.0
      %527 = vmatmul.mubr.f32.gmra.mrb[0].mxu0 %v439
      %v528 = vpop.f32.mrb[0].mxu0
      %v529 = vadd.f32 %v407, %v528
      %v530 = vpop.f32.mrb[0].mxu0
      %v531 = vadd.f32 %v407, %v530
      %532 = vmatprep.mubr.f32.mxu0 0.0
      %533 = vmatmul.mubr.f32.gmra.mrb[0].mxu0 %v442
      %v534 = vpop.f32.mrb[0].mxu0
      %v535 = vadd.f32 %v412, %v534
      %v536 = vpop.f32.mrb[0].mxu0
      %v537 = vadd.f32 %v412, %v536
      %538 = vmatprep.mubr.f32.mxu0 0.0
      %539 = vmatmul.mubr.f32.gmra.mrb[0].mxu0 %v445
      %v540 = vpop.f32.mrb[0].mxu0
      %v541 = vadd.f32 %v417, %v540
      %v542 = vpop.f32.mrb[0].mxu0
      %v543 = vadd.f32 %v417, %v542
      %544 = vmatprep.mubr.f32.mxu0 0.0
      %545 = vmatmul.mubr.f32.gmra.mrb[0].mxu0 %v448
      %v546 = vpop.f32.mrb[0].mxu0
      %v547 = vadd.f32 %v422, %v546
      %v548 = vpop.f32.mrb[0].mxu0
      %v549 = vadd.f32 %v422, %v548
      %550 = vmatprep.mubr.f32.mxu0 0.0
      %551 = vmatmul.mubr.f32.gmra.mrb[0].mxu0 %v451
      %v552 = vpop.f32.mrb[0].mxu0
      %v553 = vadd.f32 %v427, %v552
      %v554 = vpop.f32.mrb[0].mxu0
      %v555 = vadd.f32 %v427, %v554
      %556 = vmatprep.mubr.f32.mxu0 0.0
      %557 = vmatmul.mubr.f32.gmra.mrb[0].mxu0 %v454
      %v558 = vpop.f32.mrb[0].mxu0
      %v559 = vadd.f32 %v432, %v558
      %v560 = vpop.f32.mrb[0].mxu0
      %v561 = vadd.f32 %v432, %v560
      %562 = vdwg.mxu0
      %v563 = vmax.f32 %v523, 0.0
      %v564 = vmax.f32 %v525, 0.0
      %v565 = vmax.f32 %v529, 0.0
      %v566 = vmax.f32 %v531, 0.0
      %v567 = vmax.f32 %v535, 0.0
      %v568 = vmax.f32 %v537, 0.0
      %v569 = vmax.f32 %v541, 0.0
      %v570 = vmax.f32 %v543, 0.0
      %v571 = vmax.f32 %v547, 0.0
      %v572 = vmax.f32 %v549, 0.0
      %v573 = vmax.f32 %v553, 0.0
      %v574 = vmax.f32 %v555, 0.0
      %v575 = vmax.f32 %v559, 0.0
      %v576 = vmax.f32 %v561, 0.0
      %v577 = vld [vmem:[%s3] sm:$0xff]
      %v578 = vld [vmem:[%s3 + $0x8] sm:$0xff]
      %v579 = vld [vmem:[%s3 + $0x10] sm:$0xff]
      %v580 = vld [vmem:[%s3 + $0x18] sm:$0xff]
      %v581 = vld [vmem:[%s3 + $0x20] sm:$0xff]
      %v582 = vld [vmem:[%s3 + $0x28] sm:$0xff]
      %v583 = vld [vmem:[%s3 + $0x30] sm:$0x7]
      %v584 = vld [vmem:[%s4] sm:$0xff]
      %v585 = vld [vmem:[%s4 + $0x8] sm:$0xff]
      %v586 = vld [vmem:[%s4 + $0x10] sm:$0xff]
      %v587 = vld [vmem:[%s4 + $0x18] sm:$0xff]
      %v588 = vld [vmem:[%s4 + $0x20] sm:$0xff]
      %v589 = vld [vmem:[%s4 + $0x28] sm:$0xff]
      %v590 = vld [vmem:[%s4 + $0x30] sm:$0x7]
      %592 = vset.pattern.permute.xlu0 0
      %593 = vperm.xlu0 %592, %v584
      %v594 = vpop.permute.xlu0 %593
      %597 = vset.pattern.permute.xlu0 0
      %598 = vperm.xlu0 %597, %v585
      %v599 = vpop.permute.xlu0 %598
      %602 = vset.pattern.permute.xlu0 0
      %603 = vperm.xlu0 %602, %v586
      %v604 = vpop.permute.xlu0 %603
      %607 = vset.pattern.permute.xlu0 0
      %608 = vperm.xlu0 %607, %v587
      %v609 = vpop.permute.xlu0 %608
      %612 = vset.pattern.permute.xlu0 0
      %613 = vperm.xlu0 %612, %v588
      %v614 = vpop.permute.xlu0 %613
      %617 = vset.pattern.permute.xlu0 0
      %618 = vperm.xlu0 %617, %v589
      %v619 = vpop.permute.xlu0 %618
      %622 = vset.pattern.permute.xlu0 0
      %623 = vperm.xlu0 %622, %v590
      %v624 = vpop.permute.xlu0 %623
      %vm626 = vcmask 416768
      %v628 = vsel %vm626, %v577, 0
      %v631 = vsel %vm626, %v578, 0
      %v634 = vsel %vm626, %v579, 0
      %v637 = vsel %vm626, %v580, 0
      %v640 = vsel %vm626, %v581, 0
      %v643 = vsel %vm626, %v582, 0
      %v646 = vsel %vm626, %v583, 0
      %vm648 = vcmask 1042432
      %v650 = vsel %vm648, %v575, 0
      %v653 = vsel %vm648, %v576, 0
      %655 = vmatprep.subr.mxu0 %v564
      %656 = vmatpush1.msra.mxu0 %v563
      %657 = vmatprep.subr.mxu0 %v566
      %658 = vmatpush1.msra.mxu0 %v565
      %659 = vmatprep.subr.mxu0 %v568
      %660 = vmatpush1.msra.mxu0 %v567
      %661 = vmatprep.subr.mxu0 %v570
      %662 = vmatpush1.msra.mxu0 %v569
      %663 = vmatprep.subr.mxu0 %v572
      %664 = vmatpush1.msra.mxu0 %v571
      %665 = vmatprep.subr.mxu0 %v574
      %666 = vmatpush1.msra.mxu0 %v573
      %667 = vmatprep.subr.mxu0 %v653
      %668 = vmatpush1.msra.mxu0 %v650
      %669 = vmatprep.subr.mxu0 0.0
      %670 = vmatpush1.msra.mxu0 0.0
      %671 = vmatprep.subr.mxu0 0.0
      %672 = vmatpush1.msra.mxu0 0.0
      %673 = vmatprep.subr.mxu0 0.0
      %674 = vmatpush1.msra.mxu0 0.0
      %675 = vmatprep.subr.mxu0 0.0
      %676 = vmatpush1.msra.mxu0 0.0
      %677 = vmatprep.subr.mxu0 0.0
      %678 = vmatpush1.msra.mxu0 0.0
      %679 = vmatprep.subr.mxu0 0.0
      %680 = vmatpush1.msra.mxu0 0.0
      %681 = vmatprep.subr.mxu0 0.0
      %682 = vmatpush1.msra.mxu0 0.0
      %683 = vmatprep.subr.mxu0 0.0
      %684 = vmatpush1.msra.mxu0 0.0
      %685 = vmatprep.subr.mxu0 0.0
      %686 = vmatpush1.msra.mxu0 0.0
      %687 = vmatprep.subr.mxu0 0.0
      %688 = vmatpush1.msra.mxu0 0.0
      %689 = vmatprep.subr.mxu0 0.0
      %690 = vmatpush1.msra.mxu0 0.0
      %691 = vmatprep.subr.mxu0 0.0
      %692 = vmatpush1.msra.mxu0 0.0
      %693 = vmatprep.subr.mxu0 0.0
      %694 = vmatpush1.msra.mxu0 0.0
      %695 = vmatprep.subr.mxu0 0.0
      %696 = vmatpush1.msra.mxu0 0.0
      %697 = vmatprep.subr.mxu0 0.0
      %698 = vmatpush1.msra.mxu0 0.0
      %699 = vmatprep.subr.mxu0 0.0
      %700 = vmatpush1.msra.mxu0 0.0
      %701 = vmatprep.subr.mxu0 0.0
      %702 = vmatpush1.msra.mxu0 0.0
      %703 = vmatprep.subr.mxu0 0.0
      %704 = vmatpush1.msra.mxu0 0.0
      %705 = vmatprep.subr.mxu0 0.0
      %706 = vmatpush1.msra.mxu0 0.0
      %707 = vmatprep.subr.mxu0 0.0
      %708 = vmatpush1.msra.mxu0 0.0
      %709 = vmatprep.subr.mxu0 0.0
      %710 = vmatpush1.msra.mxu0 0.0
      %711 = vmatprep.subr.mxu0 0.0
      %712 = vmatpush1.msra.mxu0 0.0
      %713 = vmatprep.subr.mxu0 0.0
      %714 = vmatpush1.msra.mxu0 0.0
      %715 = vmatprep.subr.mxu0 0.0
      %716 = vmatpush1.msra.mxu0 0.0
      %717 = vmatprep.subr.mxu0 0.0
      %718 = vmatpush1.msra.mxu0 0.0
      %719 = vmatprep.mubr.f32.mxu0 0.0
      %720 = vmatmul.mubr.f32.gmra.mrb[0].mxu0 %v628
      %v721 = vpop.f32.mrb[0].mxu0
      %v722 = vadd.f32 %v594, %v721
      %v723 = vpop.f32.mrb[0].mxu0
      %v724 = vadd.f32 %v594, %v723
      %725 = vmatprep.mubr.f32.mxu0 0.0
      %726 = vmatmul.mubr.f32.gmra.mrb[0].mxu0 %v631
      %v727 = vpop.f32.mrb[0].mxu0
      %v728 = vadd.f32 %v599, %v727
      %v729 = vpop.f32.mrb[0].mxu0
      %v730 = vadd.f32 %v599, %v729
      %731 = vmatprep.mubr.f32.mxu0 0.0
      %732 = vmatmul.mubr.f32.gmra.mrb[0].mxu0 %v634
      %v733 = vpop.f32.mrb[0].mxu0
      %v734 = vadd.f32 %v604, %v733
      %v735 = vpop.f32.mrb[0].mxu0
      %v736 = vadd.f32 %v604, %v735
      %737 = vmatprep.mubr.f32.mxu0 0.0
      %738 = vmatmul.mubr.f32.gmra.mrb[0].mxu0 %v637
      %v739 = vpop.f32.mrb[0].mxu0
      %v740 = vadd.f32 %v609, %v739
      %v741 = vpop.f32.mrb[0].mxu0
      %v742 = vadd.f32 %v609, %v741
      %743 = vmatprep.mubr.f32.mxu0 0.0
      %744 = vmatmul.mubr.f32.gmra.mrb[0].mxu0 %v640
      %v745 = vpop.f32.mrb[0].mxu0
      %v746 = vadd.f32 %v614, %v745
      %v747 = vpop.f32.mrb[0].mxu0
      %v748 = vadd.f32 %v614, %v747
      %749 = vmatprep.mubr.f32.mxu0 0.0
      %750 = vmatmul.mubr.f32.gmra.mrb[0].mxu0 %v643
      %v751 = vpop.f32.mrb[0].mxu0
      %v752 = vadd.f32 %v619, %v751
      %v753 = vpop.f32.mrb[0].mxu0
      %v754 = vadd.f32 %v619, %v753
      %755 = vmatprep.mubr.f32.mxu0 0.0
      %756 = vmatmul.mubr.f32.gmra.mrb[0].mxu0 %v646
      %v757 = vpop.f32.mrb[0].mxu0
      %v758 = vadd.f32 %v624, %v757
      %v759 = vpop.f32.mrb[0].mxu0
      %v760 = vadd.f32 %v624, %v759
      %761 = vdwg.mxu0
      %762 = vst [vmem:[%s357] sm:$0xff] %v722
      %763 = vst [vmem:[%s357 + $0x8] sm:$0xff] %v724
      %764 = vst [vmem:[%s357 + $0x10] sm:$0xff] %v728
      %765 = vst [vmem:[%s357 + $0x18] sm:$0xff] %v730
      %766 = vst [vmem:[%s357 + $0x20] sm:$0xff] %v734
      %767 = vst [vmem:[%s357 + $0x28] sm:$0xff] %v736
      %768 = vst [vmem:[%s357 + $0x30] sm:$0xff] %v740
      %769 = vst [vmem:[%s357 + $0x38] sm:$0xff] %v742
      %770 = vst [vmem:[%s357 + $0x40] sm:$0xff] %v746
      %771 = vst [vmem:[%s357 + $0x48] sm:$0xff] %v748
      %772 = vst [vmem:[%s357 + $0x50] sm:$0xff] %v752
      %773 = vst [vmem:[%s357 + $0x58] sm:$0xff] %v754
      %774 = vst [vmem:[%s357 + $0x60] sm:$0x7] %v758
      %775 = vst [vmem:[%s357 + $0x68] sm:$0x7] %v760
      %v776 = vld [vmem:[%s5] sm:$0xff]
      %v777 = vld [vmem:[%s5 + $0x8] sm:$0xff]
      %v778 = vld [vmem:[%s5 + $0x10] sm:$0xff]
      %v779 = vld [vmem:[%s5 + $0x18] sm:$0xff]
      %v780 = vld [vmem:[%s5 + $0x20] sm:$0xff]
      %v781 = vld [vmem:[%s5 + $0x28] sm:$0xff]
      %v782 = vld [vmem:[%s5 + $0x30] sm:$0x7]
      %v783 = vld [vmem:[%s6] sm:$0xff]
      %v784 = vld [vmem:[%s6 + $0x8] sm:$0xff]
      %v785 = vld [vmem:[%s6 + $0x10] sm:$0xff]
      %v786 = vld [vmem:[%s6 + $0x18] sm:$0xff]
      %v787 = vld [vmem:[%s6 + $0x20] sm:$0xff]
      %v788 = vld [vmem:[%s6 + $0x28] sm:$0xff]
      %v789 = vld [vmem:[%s6 + $0x30] sm:$0x7]
      %791 = vset.pattern.permute.xlu0 0
      %792 = vperm.xlu0 %791, %v783
      %v793 = vpop.permute.xlu0 %792
      %796 = vset.pattern.permute.xlu0 0
      %797 = vperm.xlu0 %796, %v784
      %v798 = vpop.permute.xlu0 %797
      %801 = vset.pattern.permute.xlu0 0
      %802 = vperm.xlu0 %801, %v785
      %v803 = vpop.permute.xlu0 %802
      %806 = vset.pattern.permute.xlu0 0
      %807 = vperm.xlu0 %806, %v786
      %v808 = vpop.permute.xlu0 %807
      %811 = vset.pattern.permute.xlu0 0
      %812 = vperm.xlu0 %811, %v787
      %v813 = vpop.permute.xlu0 %812
      %816 = vset.pattern.permute.xlu0 0
      %817 = vperm.xlu0 %816, %v788
      %v818 = vpop.permute.xlu0 %817
      %821 = vset.pattern.permute.xlu0 0
      %822 = vperm.xlu0 %821, %v789
      %v823 = vpop.permute.xlu0 %822
      %v826 = vsel %vm626, %v776, 0
      %v829 = vsel %vm626, %v777, 0
      %v832 = vsel %vm626, %v778, 0
      %v835 = vsel %vm626, %v779, 0
      %v838 = vsel %vm626, %v780, 0
      %v841 = vsel %vm626, %v781, 0
      %v844 = vsel %vm626, %v782, 0
      %846 = vmatprep.subr.mxu0 %v564
      %847 = vmatpush1.msra.mxu0 %v563
      %848 = vmatprep.subr.mxu0 %v566
      %849 = vmatpush1.msra.mxu0 %v565
      %850 = vmatprep.subr.mxu0 %v568
      %851 = vmatpush1.msra.mxu0 %v567
      %852 = vmatprep.subr.mxu0 %v570
      %853 = vmatpush1.msra.mxu0 %v569
      %854 = vmatprep.subr.mxu0 %v572
      %855 = vmatpush1.msra.mxu0 %v571
      %856 = vmatprep.subr.mxu0 %v574
      %857 = vmatpush1.msra.mxu0 %v573
      %858 = vmatprep.subr.mxu0 %v653
      %859 = vmatpush1.msra.mxu0 %v650
      %860 = vmatprep.subr.mxu0 0.0
      %861 = vmatpush1.msra.mxu0 0.0
      %862 = vmatprep.subr.mxu0 0.0
      %863 = vmatpush1.msra.mxu0 0.0
      %864 = vmatprep.subr.mxu0 0.0
      %865 = vmatpush1.msra.mxu0 0.0
      %866 = vmatprep.subr.mxu0 0.0
      %867 = vmatpush1.msra.mxu0 0.0
      %868 = vmatprep.subr.mxu0 0.0
      %869 = vmatpush1.msra.mxu0 0.0
      %870 = vmatprep.subr.mxu0 0.0
      %871 = vmatpush1.msra.mxu0 0.0
      %872 = vmatprep.subr.mxu0 0.0
      %873 = vmatpush1.msra.mxu0 0.0
      %874 = vmatprep.subr.mxu0 0.0
      %875 = vmatpush1.msra.mxu0 0.0
      %876 = vmatprep.subr.mxu0 0.0
      %877 = vmatpush1.msra.mxu0 0.0
      %878 = vmatprep.subr.mxu0 0.0
      %879 = vmatpush1.msra.mxu0 0.0
      %880 = vmatprep.subr.mxu0 0.0
      %881 = vmatpush1.msra.mxu0 0.0
      %882 = vmatprep.subr.mxu0 0.0
      %883 = vmatpush1.msra.mxu0 0.0
      %884 = vmatprep.subr.mxu0 0.0
      %885 = vmatpush1.msra.mxu0 0.0
      %886 = vmatprep.subr.mxu0 0.0
      %887 = vmatpush1.msra.mxu0 0.0
      %888 = vmatprep.subr.mxu0 0.0
      %889 = vmatpush1.msra.mxu0 0.0
      %890 = vmatprep.subr.mxu0 0.0
      %891 = vmatpush1.msra.mxu0 0.0
      %892 = vmatprep.subr.mxu0 0.0
      %893 = vmatpush1.msra.mxu0 0.0
      %894 = vmatprep.subr.mxu0 0.0
      %895 = vmatpush1.msra.mxu0 0.0
      %896 = vmatprep.subr.mxu0 0.0
      %897 = vmatpush1.msra.mxu0 0.0
      %898 = vmatprep.subr.mxu0 0.0
      %899 = vmatpush1.msra.mxu0 0.0
      %900 = vmatprep.subr.mxu0 0.0
      %901 = vmatpush1.msra.mxu0 0.0
      %902 = vmatprep.subr.mxu0 0.0
      %903 = vmatpush1.msra.mxu0 0.0
      %904 = vmatprep.subr.mxu0 0.0
      %905 = vmatpush1.msra.mxu0 0.0
      %906 = vmatprep.subr.mxu0 0.0
      %907 = vmatpush1.msra.mxu0 0.0
      %908 = vmatprep.subr.mxu0 0.0
      %909 = vmatpush1.msra.mxu0 0.0
      %910 = vmatprep.mubr.f32.mxu0 0.0
      %911 = vmatmul.mubr.f32.gmra.mrb[0].mxu0 %v826
      %v912 = vpop.f32.mrb[0].mxu0
      %v913 = vadd.f32 %v793, %v912
      %v914 = vpop.f32.mrb[0].mxu0
      %v915 = vadd.f32 %v793, %v914
      %916 = vmatprep.mubr.f32.mxu0 0.0
      %917 = vmatmul.mubr.f32.gmra.mrb[0].mxu0 %v829
      %v918 = vpop.f32.mrb[0].mxu0
      %v919 = vadd.f32 %v798, %v918
      %v920 = vpop.f32.mrb[0].mxu0
      %v921 = vadd.f32 %v798, %v920
      %922 = vmatprep.mubr.f32.mxu0 0.0
      %923 = vmatmul.mubr.f32.gmra.mrb[0].mxu0 %v832
      %v924 = vpop.f32.mrb[0].mxu0
      %v925 = vadd.f32 %v803, %v924
      %v926 = vpop.f32.mrb[0].mxu0
      %v927 = vadd.f32 %v803, %v926
      %928 = vmatprep.mubr.f32.mxu0 0.0
      %929 = vmatmul.mubr.f32.gmra.mrb[0].mxu0 %v835
      %v930 = vpop.f32.mrb[0].mxu0
      %v931 = vadd.f32 %v808, %v930
      %v932 = vpop.f32.mrb[0].mxu0
      %v933 = vadd.f32 %v808, %v932
      %934 = vmatprep.mubr.f32.mxu0 0.0
      %935 = vmatmul.mubr.f32.gmra.mrb[0].mxu0 %v838
      %v936 = vpop.f32.mrb[0].mxu0
      %v937 = vadd.f32 %v813, %v936
      %v938 = vpop.f32.mrb[0].mxu0
      %v939 = vadd.f32 %v813, %v938
      %940 = vmatprep.mubr.f32.mxu0 0.0
      %941 = vmatmul.mubr.f32.gmra.mrb[0].mxu0 %v841
      %v942 = vpop.f32.mrb[0].mxu0
      %v943 = vadd.f32 %v818, %v942
      %v944 = vpop.f32.mrb[0].mxu0
      %v945 = vadd.f32 %v818, %v944
      %946 = vmatprep.mubr.f32.mxu0 0.0
      %947 = vmatmul.mubr.f32.gmra.mrb[0].mxu0 %v844
      %v948 = vpop.f32.mrb[0].mxu0
      %v949 = vadd.f32 %v823, %v948
      %v950 = vpop.f32.mrb[0].mxu0
      %v951 = vadd.f32 %v823, %v950
      %952 = vdwg.mxu0
      %953 = vst [vmem:[%s367] sm:$0xff] %v913
      %954 = vst [vmem:[%s367 + $0x8] sm:$0xff] %v915
      %955 = vst [vmem:[%s367 + $0x10] sm:$0xff] %v919
      %956 = vst [vmem:[%s367 + $0x18] sm:$0xff] %v921
      %957 = vst [vmem:[%s367 + $0x20] sm:$0xff] %v925
      %958 = vst [vmem:[%s367 + $0x28] sm:$0xff] %v927
      %959 = vst [vmem:[%s367 + $0x30] sm:$0xff] %v931
      %960 = vst [vmem:[%s367 + $0x38] sm:$0xff] %v933
      %961 = vst [vmem:[%s367 + $0x40] sm:$0xff] %v937
      %962 = vst [vmem:[%s367 + $0x48] sm:$0xff] %v939
      %963 = vst [vmem:[%s367 + $0x50] sm:$0xff] %v943
      %964 = vst [vmem:[%s367 + $0x58] sm:$0xff] %v945
      %965 = vst [vmem:[%s367 + $0x60] sm:$0x7] %v949
      %966 = vst [vmem:[%s367 + $0x68] sm:$0x7] %v951
      %s967 = smul.u32 2, %s25
      %p968 = scmp.lt.s32.totalorder %s24, 1
      %s969 = scalar_select %p968, %s24, 1
      %p970 = scmp.lt.s32.totalorder %s967, 1
      %s971 = scalar_select %p970, %s967, 1
      %s972 = smul.addr %s969, 14
      %s973 = sadd.s32 %s971, %s972
      %s974 = smul.addr %s973, 8
      %s975 = scalar_lea.vmem %s7, %s974
      %s976 = smul.u32 2, %s25
      %p977 = scmp.lt.s32.totalorder %s24, 1
      %s978 = scalar_select %p977, %s24, 1
      %p979 = scmp.lt.s32.totalorder %s976, 1
      %s980 = scalar_select %p979, %s976, 1
      %s981 = smul.addr %s978, 14
      %s982 = sadd.s32 %s980, %s981
      %s983 = smul.addr %s982, 8
      %s984 = scalar_lea.vmem %s8, %s983
      // Predicated region
      $region49: #{final_layer_forward.1} parent=47 // pred_check
        %p985 = pneg %p206
      $region50: #{final_layer_forward.1} parent=47 // pred_check_branch
        %987 = sbr.rel (%p985) target = $region52
      $region51: #{final_layer_forward.1} parent=47 // pred_region
        %s988 = smul.u32 2, %s25
      $region52: #{final_layer_forward.1} parent=47 // pred_fallthru
        _
      // Predicated region
      $region53: #{final_layer_forward.1} parent=47 // pred_check
        %p989 = pneg %p234
      $region54: #{final_layer_forward.1} parent=47 // pred_check_branch
        %991 = sbr.rel (%p989) target = $region56
      $region55: #{final_layer_forward.1} parent=47 // pred_region
        %s992 = smul.u32 2, %s25
      $region56: #{final_layer_forward.1} parent=47 // pred_fallthru
        _
    $region48: #{final_layer_forward.1} parent=5 // pred_fallthru
      _
    %p993 = scmp.le.s32.totalorder 2, %s15
    // Predicated region
    $region57: #{final_layer_forward.1} parent=5 // pred_check
      %p994 = pneg %p993
    $region58: #{final_layer_forward.1} parent=5 // pred_check_branch
      %996 = sbr.rel (%p994) target = $region60
    $region59: #{final_layer_forward.1} parent=5 // pred_region
      %s997 = ssub.s32 %s15, 2
      // Predicated region
      $region61: #{final_layer_forward.1} parent=59 // pred_check
        %p998 = pneg %p212
      $region62: #{final_layer_forward.1} parent=59 // pred_check_branch
        %1000 = sbr.rel (%p998) target = $region64
      $region63: #{final_layer_forward.1} parent=59 // pred_region
        %s1001 = smul.u32 2, %s27
        %p1002 = scmp.lt.s32.totalorder %s26, 1
        %s1003 = scalar_select %p1002, %s26, 1
        %p1004 = scmp.lt.s32.totalorder %s1001, 1
        %s1005 = scalar_select %p1004, %s1001, 1
        %s1006 = smul.addr %s1003, 14
        %s1007 = sadd.s32 %s1005, %s1006
        %s1008 = smul.addr %s1007, 8
        %s1009 = scalar_lea.vmem %s7, %s1008
      $region64: #{final_layer_forward.1} parent=59 // pred_fallthru
        _
      // Predicated region
      $region65: #{final_layer_forward.1} parent=59 // pred_check
        %p1010 = pneg %p240
      $region66: #{final_layer_forward.1} parent=59 // pred_check_branch
        %1012 = sbr.rel (%p1010) target = $region68
      $region67: #{final_layer_forward.1} parent=59 // pred_region
        %s1013 = smul.u32 2, %s27
        %p1014 = scmp.lt.s32.totalorder %s26, 1
        %s1015 = scalar_select %p1014, %s26, 1
        %p1016 = scmp.lt.s32.totalorder %s1013, 1
        %s1017 = scalar_select %p1016, %s1013, 1
        %s1018 = smul.addr %s1015, 14
        %s1019 = sadd.s32 %s1017, %s1018
        %s1020 = smul.addr %s1019, 8
        %s1021 = scalar_lea.vmem %s8, %s1020
      $region68: #{final_layer_forward.1} parent=59 // pred_fallthru
        _
    $region60: #{final_layer_forward.1} parent=5 // pred_fallthru
      _
  $region6: #{final_layer_forward.1} parent=0 // loop_footer
    %s19 = sadd.s32 1, %s15
  $region7: #{final_layer_forward.1} parent=0 // loop_footer_branch
    %14 = sbr.rel target = $region3
  $region8: #{final_layer_forward.1} parent=0 // loop_exit
    _

</llo_original>
